<compile_context>
chip_gen: v6e
topology: v6e:2x2x1
jax: 0.10.0
libtpu: 0.0.40
codegen_flags: <defaults>
</compile_context>

<pallas_src>
import jax
import jax.numpy as jnp
from jax import lax
from jax.experimental import pallas as pl
from jax.experimental.pallas import tpu as pltpu

GAMMA = 0.5  # deterministic "parameter" of the fixed symbolic sub_module


def _round_up(v: int, m: int) -> int:
    return ((v + m - 1) // m) * m


def _sympy_rbf_kernel(x_ref, xx_ref, y_ref, yy_ref, o_ref):
    # x_ref : (tm, dp)   row tile of x
    # xx_ref: (tm, 1)    precomputed ||x_i||^2 for this row tile
    # y_ref : (tn, dp)   column tile of y
    # yy_ref: (1, tn)    precomputed ||y_j||^2 for this column tile (lane-major)
    # o_ref : (tm, tn)
    x = x_ref[...]
    y = y_ref[...]

    # MXU matmul contracting the feature (last) dims directly: no y.T relayout.
    xy = lax.dot_general(
        x, y,
        dimension_numbers=(((1,), (1,)), ((), ())),
        preferred_element_type=jnp.float32,
        precision=lax.Precision.HIGHEST,
    )  # (tm, tn)

    d2 = xx_ref[...] + yy_ref[...] - 2.0 * xy
    d2 = jnp.maximum(d2, 0.0)  # guard tiny negatives from cancellation
    o_ref[...] = jnp.exp(-GAMMA * d2).astype(o_ref.dtype)


def sympy_kernel(x: jax.Array, y: jax.Array, *, tm: int = 256, tn: int = 512) -> jax.Array:
    """Pairwise symbolic kernel matrix K[i, j] = exp(-gamma * ||x_i - y_j||^2)."""
    if x.shape[-1] != y.shape[-1]:
        raise ValueError("Expected dimension of input to match sym vectors")
    n_row, d = x.shape
    n_col, _ = y.shape

    # Keep elementwise math in f32 everywhere (v5e has no bf16 VPU/EUP).
    x32 = x.astype(jnp.float32)
    y32 = y.astype(jnp.float32)

    # Clamp tiles for tiny inputs while keeping alignment (tm % 8, tn % 128).
    tm = max(8, min(tm, _round_up(n_row, 8)))
    tn = max(128, min(tn, _round_up(n_col, 128)))

    n_row_p = _round_up(n_row, tm)
    n_col_p = _round_up(n_col, tn)
    d_p = _round_up(d, 8)  # zero-padding on the feature dim is exact for dot / norms

    xp = jnp.zeros((n_row_p, d_p), jnp.float32).at[:n_row, :d].set(x32)
    yp = jnp.zeros((n_col_p, d_p), jnp.float32).at[:n_col, :d].set(y32)

    # Hoisted squared norms (computed once, outside the grid loop).
    xx = jnp.sum(xp * xp, axis=-1, keepdims=True)                       # (n_row_p, 1)
    yy = jnp.sum(yp * yp, axis=-1, keepdims=True).reshape(1, n_col_p)   # (1, n_col_p)

    grid = (n_row_p // tm, n_col_p // tn)

    out = pl.pallas_call(
        _sympy_rbf_kernel,
        out_shape=jax.ShapeDtypeStruct((n_row_p, n_col_p), jnp.float32),
        grid_spec=pltpu.PrefetchScalarGridSpec(
            num_scalar_prefetch=0,
            grid=grid,
            in_specs=[
                pl.BlockSpec((tm, d_p), lambda i, j: (i, 0)),   # x row tile
                pl.BlockSpec((tm, 1), lambda i, j: (i, 0)),     # ||x||^2 row tile
                pl.BlockSpec((tn, d_p), lambda i, j: (j, 0)),   # y col tile
                pl.BlockSpec((1, tn), lambda i, j: (0, j)),     # ||y||^2 col tile
            ],
            out_specs=pl.BlockSpec((tm, tn), lambda i, j: (i, j)),
        ),
        compiler_params=pltpu.CompilerParams(
            dimension_semantics=("parallel", "parallel"),
            vmem_limit_bytes=48 * 1024 * 1024,  # fits v7x (64 MiB physical) with headroom
        ),
    )(xp, xx, yp, yy)

    return out[:n_row, :n_col]


def sympy_kernel_ref(x, y):
    """Pure-JAX reference matching the PyTorch forward (cartesian_prod + view)."""
    n_row, _ = x.shape
    n_col, _ = y.shape
    idx1, idx2 = jnp.meshgrid(jnp.arange(n_row), jnp.arange(n_col), indexing="ij")
    x_ = x[idx1.reshape(-1)]
    y_ = y[idx2.reshape(-1)]
    d2 = jnp.sum((x_ - y_) ** 2, axis=-1)
    return jnp.exp(-GAMMA * d2).reshape(n_row, n_col)


if __name__ == "__main__":
    key = jax.random.PRNGKey(0)
    kx, ky = jax.random.split(key)
    n_row, n_col, d = 16, 16, 8  # small shapes; len(x_var) == len(y_var) == d
    x = jax.random.normal(kx, (n_row, d), dtype=jnp.float32)
    y = jax.random.normal(ky, (n_col, d), dtype=jnp.float32)

    out = sympy_kernel(x, y)
    out = jax.block_until_ready(out)

    ref = sympy_kernel_ref(x, y)
    assert out.shape == (n_row, n_col)
    assert jnp.allclose(out, ref, atol=1e-5, rtol=1e-5), "mismatch vs reference"

    print("KERNEL_OK")
</pallas_src>

<mosaic_0001>
module attributes {stable_mosaic.version = 11 : i64} {
  func.func @_sympy_rbf_kernel(%arg0: i32, %arg1: i32, %arg2: memref<16x8xf32, #tpu.memory_space<vmem>>, %arg3: memref<16x1xf32, #tpu.memory_space<vmem>>, %arg4: memref<128x8xf32, #tpu.memory_space<vmem>>, %arg5: memref<1x128xf32, #tpu.memory_space<vmem>>, %arg6: memref<16x128xf32, #tpu.memory_space<vmem>>) attributes {dimension_semantics = [#tpu.dimension_semantics<parallel>, #tpu.dimension_semantics<parallel>], iteration_bounds = array<i64: 1, 1>, scalar_prefetch = 0 : i64, scratch_operands = 0 : i64, tpu.core_type = #tpu.core_type<tc>, window_params = [{transform_indices = @transform_0, window_bounds = array<i64: 16, 8>}, {transform_indices = @transform_1, window_bounds = array<i64: 16, 1>}, {transform_indices = @transform_2, window_bounds = array<i64: 128, 8>}, {transform_indices = @transform_3, window_bounds = array<i64: 1, 128>}, {transform_indices = @transform_4, window_bounds = array<i64: 16, 128>}]} {
    %c0 = arith.constant 0 : index
    %c0_0 = arith.constant 0 : index
    %0 = vector.load %arg2[%c0, %c0_0] : memref<16x8xf32, #tpu.memory_space<vmem>>, vector<16x8xf32>
    %c0_1 = arith.constant 0 : index
    %c0_2 = arith.constant 0 : index
    %1 = vector.load %arg4[%c0_1, %c0_2] : memref<128x8xf32, #tpu.memory_space<vmem>>, vector<128x8xf32>
    %cst = arith.constant dense<0.000000e+00> : vector<16x128xf32>
    %2 = tpu.matmul %0, %1, %cst {dimension_numbers = #tpu.dot_dimension_numbers<[1], [1], [0], [0], [0, 0, 1, 0], [], []>, precision = #tpu.contract_precision<fp32>} : vector<16x8xf32>, vector<128x8xf32>, vector<16x128xf32> -> vector<16x128xf32>
    %c0_3 = arith.constant 0 : index
    %c0_4 = arith.constant 0 : index
    %3 = vector.load %arg3[%c0_3, %c0_4] : memref<16x1xf32, #tpu.memory_space<vmem>>, vector<16x1xf32>
    %c0_5 = arith.constant 0 : index
    %c0_6 = arith.constant 0 : index
    %4 = vector.load %arg5[%c0_5, %c0_6] : memref<1x128xf32, #tpu.memory_space<vmem>>, vector<1x128xf32>
    %5 = vector.broadcast %3 : vector<16x1xf32> to vector<16x128xf32>
    %6 = vector.broadcast %4 : vector<1x128xf32> to vector<16x128xf32>
    %7 = arith.addf %5, %6 : vector<16x128xf32>
    %cst_7 = arith.constant 2.000000e+00 : f32
    %8 = vector.broadcast %cst_7 : f32 to vector<16x128xf32>
    %9 = arith.mulf %8, %2 : vector<16x128xf32>
    %10 = arith.subf %7, %9 : vector<16x128xf32>
    %cst_8 = arith.constant 0.000000e+00 : f32
    %11 = vector.broadcast %cst_8 : f32 to vector<16x128xf32>
    %12 = arith.maximumf %10, %11 : vector<16x128xf32>
    %cst_9 = arith.constant -5.000000e-01 : f32
    %13 = vector.broadcast %cst_9 : f32 to vector<16x128xf32>
    %14 = arith.mulf %13, %12 : vector<16x128xf32>
    %15 = math.exp %14 : vector<16x128xf32>
    %c0_10 = arith.constant 0 : index
    %c0_11 = arith.constant 0 : index
    %16 = vector.load %arg6[%c0_10, %c0_11] : memref<16x128xf32, #tpu.memory_space<vmem>>, vector<16x128xf32>
    tpu.vector_store %arg6[%c0_10, %c0_11], %15 {strides = array<i32>} : memref<16x128xf32, #tpu.memory_space<vmem>>, vector<16x128xf32>,
    return
  }
  func.func @transform_0(%arg0: i32, %arg1: i32) -> (i32, i32) {
    %c0_i32 = arith.constant 0 : i32
    %c0_i32_0 = arith.constant 0 : i32
    return %arg0, %c0_i32 : i32, i32
  }
  func.func @transform_1(%arg0: i32, %arg1: i32) -> (i32, i32) {
    %c0_i32 = arith.constant 0 : i32
    %c0_i32_0 = arith.constant 0 : i32
    return %arg0, %c0_i32 : i32, i32
  }
  func.func @transform_2(%arg0: i32, %arg1: i32) -> (i32, i32) {
    %c0_i32 = arith.constant 0 : i32
    %c0_i32_0 = arith.constant 0 : i32
    return %arg1, %c0_i32 : i32, i32
  }
  func.func @transform_3(%arg0: i32, %arg1: i32) -> (i32, i32) {
    %c0_i32 = arith.constant 0 : i32
    %c0_i32_0 = arith.constant 0 : i32
    return %c0_i32, %arg1 : i32, i32
  }
  func.func @transform_4(%arg0: i32, %arg1: i32) -> (i32, i32) {
    %c0_i32 = arith.constant 0 : i32
    return %arg0, %arg1 : i32, i32
  }
}

</mosaic_0001>

<llo_original>
// kernel: tpu_custom_call.1
$region0: #{tpu_custom_call.1}
  #allocation0 [shape = 'u32[]', space=smem, size = 0x4, offset = 0x4, fixed_abs, tag = 'smem constant byte address 0x4 - core index']
  #allocation1 [shape = 'u32[144,128]{1,0:T(1,128)}', space=vmem, size = 0x12000, scoped, tag = 'internal scratch']
  %s0 = inlined_call_operand.vmem [shape: f32[16,8], index: 0, kind: input, shape index: {}]
  %s1 = inlined_call_operand.vmem [shape: f32[16,1], index: 1, kind: input, shape index: {}]
  %s2 = inlined_call_operand.vmem [shape: f32[128,8], index: 2, kind: input, shape index: {}]
  %s3 = inlined_call_operand.vmem [shape: f32[1,128], index: 3, kind: input, shape index: {}]
  %s4 = inlined_call_operand.hbm [shape: f32[16,128], index: 4, kind: output, shape index: {}]
  %s5 = sld [smem:[#allocation0]]
  $region26: #{tpu_custom_call.1} parent=0
    _
  %s7 = ssub.s32 1, %s5
  %s8 = scalar_select 0, %s7, %s5
  $region1: #{tpu_custom_call.1} parent=0
    #allocation2 [shape = 'u8[8192]{0}', space=vmem, size = 0x2000, scoped, tag = 'output window, operand 0, single buffered']
    #allocation3 [shape = 's32[1]{0}', space=sflag, size = 0x4, scoped, tag = 'scoped memory for tpu_custom_call.1']
    %9 = vsyncpa [#allocation3], 0
    // Predicated region
    $region2: #{tpu_custom_call.1} parent=1 // pred_check
      _
    $region3: #{tpu_custom_call.1} parent=1 // pred_check_branch
      %11 = sbr.rel (0) target = $region5
    $region4: #{tpu_custom_call.1} parent=1 // pred_region
      _
    $region5: #{tpu_custom_call.1} parent=1 // pred_fallthru
      _
    // Predicated region
    $region6: #{tpu_custom_call.1} parent=1 // pred_check
      _
    $region7: #{tpu_custom_call.1} parent=1 // pred_check_branch
      %13 = sbr.rel (0) target = $region9
    $region8: #{tpu_custom_call.1} parent=1 // pred_region
      _
    $region9: #{tpu_custom_call.1} parent=1 // pred_fallthru
      _
    // Predicated region
    $region10: #{tpu_custom_call.1} parent=1 // pred_check
      _
    $region11: #{tpu_custom_call.1} parent=1 // pred_check_branch
      %15 = sbr.rel (0) target = $region13
    $region12: #{tpu_custom_call.1} parent=1 // pred_region
      _
    $region13: #{tpu_custom_call.1} parent=1 // pred_fallthru
      _
    // Predicated region
    $region14: #{tpu_custom_call.1} parent=1 // pred_check
      _
    $region15: #{tpu_custom_call.1} parent=1 // pred_check_branch
      %17 = sbr.rel (0) target = $region17
    $region16: #{tpu_custom_call.1} parent=1 // pred_region
      _
    $region17: #{tpu_custom_call.1} parent=1 // pred_fallthru
      _
    %v18 = vld [vmem:[%s0] sm:$0xff]
    %v19 = vld [vmem:[%s0 + $0x8] sm:$0xff]
    %v20 = vld [vmem:[%s2] sm:$0xff]
    %v21 = vld [vmem:[%s2 + $0x8] sm:$0xff]
    %v22 = vld [vmem:[%s2 + $0x10] sm:$0xff]
    %v23 = vld [vmem:[%s2 + $0x18] sm:$0xff]
    %v24 = vld [vmem:[%s2 + $0x20] sm:$0xff]
    %v25 = vld [vmem:[%s2 + $0x28] sm:$0xff]
    %v26 = vld [vmem:[%s2 + $0x30] sm:$0xff]
    %v27 = vld [vmem:[%s2 + $0x38] sm:$0xff]
    %v28 = vld [vmem:[%s2 + $0x40] sm:$0xff]
    %v29 = vld [vmem:[%s2 + $0x48] sm:$0xff]
    %v30 = vld [vmem:[%s2 + $0x50] sm:$0xff]
    %v31 = vld [vmem:[%s2 + $0x58] sm:$0xff]
    %v32 = vld [vmem:[%s2 + $0x60] sm:$0xff]
    %v33 = vld [vmem:[%s2 + $0x68] sm:$0xff]
    %v34 = vld [vmem:[%s2 + $0x70] sm:$0xff]
    %v35 = vld [vmem:[%s2 + $0x78] sm:$0xff]
    %vm36 = vcmask 64512
    %v38 = vsel %vm36, %v18, 0
    %v41 = vsel %vm36, %v19, 0
    %v44 = vsel %vm36, %v20, 0
    %v47 = vsel %vm36, %v21, 0
    %v50 = vsel %vm36, %v22, 0
    %v53 = vsel %vm36, %v23, 0
    %v56 = vsel %vm36, %v24, 0
    %v59 = vsel %vm36, %v25, 0
    %v62 = vsel %vm36, %v26, 0
    %v65 = vsel %vm36, %v27, 0
    %v68 = vsel %vm36, %v28, 0
    %v71 = vsel %vm36, %v29, 0
    %v74 = vsel %vm36, %v30, 0
    %v77 = vsel %vm36, %v31, 0
    %v80 = vsel %vm36, %v32, 0
    %v83 = vsel %vm36, %v33, 0
    %v86 = vsel %vm36, %v34, 0
    %v89 = vsel %vm36, %v35, 0
    %91 = vmatprep.subr.mxu0 0.0
    %v92 = vand.u32 %v89, 4294901760
    %93 = vmatpush1.xpose.msra.mxu0 %v92
    %94 = vmatprep.subr.mxu0 0.0
    %v95 = vand.u32 %v86, 4294901760
    %96 = vmatpush1.xpose.msra.mxu0 %v95
    %97 = vmatprep.subr.mxu0 0.0
    %v98 = vand.u32 %v83, 4294901760
    %99 = vmatpush1.xpose.msra.mxu0 %v98
    %100 = vmatprep.subr.mxu0 0.0
    %v101 = vand.u32 %v80, 4294901760
    %102 = vmatpush1.xpose.msra.mxu0 %v101
    %103 = vmatprep.subr.mxu0 0.0
    %v104 = vand.u32 %v77, 4294901760
    %105 = vmatpush1.xpose.msra.mxu0 %v104
    %106 = vmatprep.subr.mxu0 0.0
    %v107 = vand.u32 %v74, 4294901760
    %108 = vmatpush1.xpose.msra.mxu0 %v107
    %109 = vmatprep.subr.mxu0 0.0
    %v110 = vand.u32 %v71, 4294901760
    %111 = vmatpush1.xpose.msra.mxu0 %v110
    %112 = vmatprep.subr.mxu0 0.0
    %v113 = vand.u32 %v68, 4294901760
    %114 = vmatpush1.xpose.msra.mxu0 %v113
    %115 = vmatprep.subr.mxu0 0.0
    %v116 = vand.u32 %v65, 4294901760
    %117 = vmatpush1.xpose.msra.mxu0 %v116
    %118 = vmatprep.subr.mxu0 0.0
    %v119 = vand.u32 %v62, 4294901760
    %120 = vmatpush1.xpose.msra.mxu0 %v119
    %121 = vmatprep.subr.mxu0 0.0
    %v122 = vand.u32 %v59, 4294901760
    %123 = vmatpush1.xpose.msra.mxu0 %v122
    %124 = vmatprep.subr.mxu0 0.0
    %v125 = vand.u32 %v56, 4294901760
    %126 = vmatpush1.xpose.msra.mxu0 %v125
    %127 = vmatprep.subr.mxu0 0.0
    %v128 = vand.u32 %v53, 4294901760
    %129 = vmatpush1.xpose.msra.mxu0 %v128
    %130 = vmatprep.subr.mxu0 0.0
    %v131 = vand.u32 %v50, 4294901760
    %132 = vmatpush1.xpose.msra.mxu0 %v131
    %133 = vmatprep.subr.mxu0 0.0
    %v134 = vand.u32 %v47, 4294901760
    %135 = vmatpush1.xpose.msra.mxu0 %v134
    %136 = vmatprep.subr.mxu0 0.0
    %v137 = vand.u32 %v44, 4294901760
    %138 = vmatpush1.xpose.msra.mxu0 %v137
    %139 = vmatprep.subr.mxu0 0.0
    %140 = vmatpush2.xpose.msra.mxu0 0.0
    %141 = vmatprep.subr.mxu0 0.0
    %142 = vmatpush2.xpose.msra.mxu0 0.0
    %143 = vmatprep.subr.mxu0 0.0
    %144 = vmatpush2.xpose.msra.mxu0 0.0
    %145 = vmatprep.subr.mxu0 0.0
    %146 = vmatpush2.xpose.msra.mxu0 0.0
    %147 = vmatprep.subr.mxu0 0.0
    %148 = vmatpush2.xpose.msra.mxu0 0.0
    %149 = vmatprep.subr.mxu0 0.0
    %150 = vmatpush2.xpose.msra.mxu0 0.0
    %151 = vmatprep.subr.mxu0 0.0
    %152 = vmatpush2.xpose.msra.mxu0 0.0
    %153 = vmatprep.subr.mxu0 0.0
    %154 = vmatpush2.xpose.msra.mxu0 0.0
    %155 = vmatprep.subr.mxu0 0.0
    %156 = vmatpush2.xpose.msra.mxu0 0.0
    %157 = vmatprep.subr.mxu0 0.0
    %158 = vmatpush2.xpose.msra.mxu0 0.0
    %159 = vmatprep.subr.mxu0 0.0
    %160 = vmatpush2.xpose.msra.mxu0 0.0
    %161 = vmatprep.subr.mxu0 0.0
    %162 = vmatpush2.xpose.msra.mxu0 0.0
    %163 = vmatprep.subr.mxu0 0.0
    %164 = vmatpush2.xpose.msra.mxu0 0.0
    %165 = vmatprep.subr.mxu0 0.0
    %166 = vmatpush2.xpose.msra.mxu0 0.0
    %167 = vmatprep.subr.mxu0 0.0
    %168 = vmatpush2.xpose.msra.mxu0 0.0
    %169 = vmatprep.subr.mxu0 0.0
    %170 = vmatpush2.xpose.msra.mxu0 0.0
    %171 = vmatprep.mubr.f32.mxu0 0.0
    %v172 = vand.u32 %v38, 4294901760
    %v173 = vsub.f32 %v38, %v172
    %v174 = vand.u32 %v173, 4294901760
    %v175 = vsub.f32 %v173, %v174
    %v176 = vand.u32 %v175, 4294901760
    %177 = vmatmul.mubr.f32.gmra.mxu0 %v176
    %v178 = vpop.f32.mrf.mxu0
    %v179 = vadd.f32 0.0, %v178
    %v180 = vpop.f32.mrf.mxu0
    %181 = vmatprep.mubr.f32.mxu0 0.0
    %v182 = vand.u32 %v41, 4294901760
    %v183 = vsub.f32 %v41, %v182
    %v184 = vand.u32 %v183, 4294901760
    %v185 = vsub.f32 %v183, %v184
    %v186 = vand.u32 %v185, 4294901760
    %187 = vmatmul.mubr.f32.gmra.mxu0 %v186
    %v188 = vpop.f32.mrf.mxu0
    %v189 = vadd.f32 0.0, %v188
    %v190 = vpop.f32.mrf.mxu0
    %191 = vdwg.mxu0
    %192 = vmatprep.subr.mxu0 0.0
    %v193 = vand.u32 %v89, 4294901760
    %v194 = vsub.f32 %v89, %v193
    %v195 = vand.u32 %v194, 4294901760
    %v196 = vsub.f32 %v194, %v195
    %v197 = vand.u32 %v196, 4294901760
    %198 = vmatpush1.xpose.msra.mxu0 %v197
    %199 = vmatprep.subr.mxu0 0.0
    %v200 = vand.u32 %v86, 4294901760
    %v201 = vsub.f32 %v86, %v200
    %v202 = vand.u32 %v201, 4294901760
    %v203 = vsub.f32 %v201, %v202
    %v204 = vand.u32 %v203, 4294901760
    %205 = vmatpush1.xpose.msra.mxu0 %v204
    %206 = vmatprep.subr.mxu0 0.0
    %v207 = vand.u32 %v83, 4294901760
    %v208 = vsub.f32 %v83, %v207
    %v209 = vand.u32 %v208, 4294901760
    %v210 = vsub.f32 %v208, %v209
    %v211 = vand.u32 %v210, 4294901760
    %212 = vmatpush1.xpose.msra.mxu0 %v211
    %213 = vmatprep.subr.mxu0 0.0
    %v214 = vand.u32 %v80, 4294901760
    %v215 = vsub.f32 %v80, %v214
    %v216 = vand.u32 %v215, 4294901760
    %v217 = vsub.f32 %v215, %v216
    %v218 = vand.u32 %v217, 4294901760
    %219 = vmatpush1.xpose.msra.mxu0 %v218
    %220 = vmatprep.subr.mxu0 0.0
    %v221 = vand.u32 %v77, 4294901760
    %v222 = vsub.f32 %v77, %v221
    %v223 = vand.u32 %v222, 4294901760
    %v224 = vsub.f32 %v222, %v223
    %v225 = vand.u32 %v224, 4294901760
    %226 = vmatpush1.xpose.msra.mxu0 %v225
    %227 = vmatprep.subr.mxu0 0.0
    %v228 = vand.u32 %v74, 4294901760
    %v229 = vsub.f32 %v74, %v228
    %v230 = vand.u32 %v229, 4294901760
    %v231 = vsub.f32 %v229, %v230
    %v232 = vand.u32 %v231, 4294901760
    %233 = vmatpush1.xpose.msra.mxu0 %v232
    %234 = vmatprep.subr.mxu0 0.0
    %v235 = vand.u32 %v71, 4294901760
    %v236 = vsub.f32 %v71, %v235
    %v237 = vand.u32 %v236, 4294901760
    %v238 = vsub.f32 %v236, %v237
    %v239 = vand.u32 %v238, 4294901760
    %240 = vmatpush1.xpose.msra.mxu0 %v239
    %241 = vmatprep.subr.mxu0 0.0
    %v242 = vand.u32 %v68, 4294901760
    %v243 = vsub.f32 %v68, %v242
    %v244 = vand.u32 %v243, 4294901760
    %v245 = vsub.f32 %v243, %v244
    %v246 = vand.u32 %v245, 4294901760
    %247 = vmatpush1.xpose.msra.mxu0 %v246
    %248 = vmatprep.subr.mxu0 0.0
    %v249 = vand.u32 %v65, 4294901760
    %v250 = vsub.f32 %v65, %v249
    %v251 = vand.u32 %v250, 4294901760
    %v252 = vsub.f32 %v250, %v251
    %v253 = vand.u32 %v252, 4294901760
    %254 = vmatpush1.xpose.msra.mxu0 %v253
    %255 = vmatprep.subr.mxu0 0.0
    %v256 = vand.u32 %v62, 4294901760
    %v257 = vsub.f32 %v62, %v256
    %v258 = vand.u32 %v257, 4294901760
    %v259 = vsub.f32 %v257, %v258
    %v260 = vand.u32 %v259, 4294901760
    %261 = vmatpush1.xpose.msra.mxu0 %v260
    %262 = vmatprep.subr.mxu0 0.0
    %v263 = vand.u32 %v59, 4294901760
    %v264 = vsub.f32 %v59, %v263
    %v265 = vand.u32 %v264, 4294901760
    %v266 = vsub.f32 %v264, %v265
    %v267 = vand.u32 %v266, 4294901760
    %268 = vmatpush1.xpose.msra.mxu0 %v267
    %269 = vmatprep.subr.mxu0 0.0
    %v270 = vand.u32 %v56, 4294901760
    %v271 = vsub.f32 %v56, %v270
    %v272 = vand.u32 %v271, 4294901760
    %v273 = vsub.f32 %v271, %v272
    %v274 = vand.u32 %v273, 4294901760
    %275 = vmatpush1.xpose.msra.mxu0 %v274
    %276 = vmatprep.subr.mxu0 0.0
    %v277 = vand.u32 %v53, 4294901760
    %v278 = vsub.f32 %v53, %v277
    %v279 = vand.u32 %v278, 4294901760
    %v280 = vsub.f32 %v278, %v279
    %v281 = vand.u32 %v280, 4294901760
    %282 = vmatpush1.xpose.msra.mxu0 %v281
    %283 = vmatprep.subr.mxu0 0.0
    %v284 = vand.u32 %v50, 4294901760
    %v285 = vsub.f32 %v50, %v284
    %v286 = vand.u32 %v285, 4294901760
    %v287 = vsub.f32 %v285, %v286
    %v288 = vand.u32 %v287, 4294901760
    %289 = vmatpush1.xpose.msra.mxu0 %v288
    %290 = vmatprep.subr.mxu0 0.0
    %v291 = vand.u32 %v47, 4294901760
    %v292 = vsub.f32 %v47, %v291
    %v293 = vand.u32 %v292, 4294901760
    %v294 = vsub.f32 %v292, %v293
    %v295 = vand.u32 %v294, 4294901760
    %296 = vmatpush1.xpose.msra.mxu0 %v295
    %297 = vmatprep.subr.mxu0 0.0
    %v298 = vand.u32 %v44, 4294901760
    %v299 = vsub.f32 %v44, %v298
    %v300 = vand.u32 %v299, 4294901760
    %v301 = vsub.f32 %v299, %v300
    %v302 = vand.u32 %v301, 4294901760
    %303 = vmatpush1.xpose.msra.mxu0 %v302
    %304 = vmatprep.subr.mxu0 0.0
    %305 = vmatpush2.xpose.msra.mxu0 0.0
    %306 = vmatprep.subr.mxu0 0.0
    %307 = vmatpush2.xpose.msra.mxu0 0.0
    %308 = vmatprep.subr.mxu0 0.0
    %309 = vmatpush2.xpose.msra.mxu0 0.0
    %310 = vmatprep.subr.mxu0 0.0
    %311 = vmatpush2.xpose.msra.mxu0 0.0
    %312 = vmatprep.subr.mxu0 0.0
    %313 = vmatpush2.xpose.msra.mxu0 0.0
    %314 = vmatprep.subr.mxu0 0.0
    %315 = vmatpush2.xpose.msra.mxu0 0.0
    %316 = vmatprep.subr.mxu0 0.0
    %317 = vmatpush2.xpose.msra.mxu0 0.0
    %318 = vmatprep.subr.mxu0 0.0
    %319 = vmatpush2.xpose.msra.mxu0 0.0
    %320 = vmatprep.subr.mxu0 0.0
    %321 = vmatpush2.xpose.msra.mxu0 0.0
    %322 = vmatprep.subr.mxu0 0.0
    %323 = vmatpush2.xpose.msra.mxu0 0.0
    %324 = vmatprep.subr.mxu0 0.0
    %325 = vmatpush2.xpose.msra.mxu0 0.0
    %326 = vmatprep.subr.mxu0 0.0
    %327 = vmatpush2.xpose.msra.mxu0 0.0
    %328 = vmatprep.subr.mxu0 0.0
    %329 = vmatpush2.xpose.msra.mxu0 0.0
    %330 = vmatprep.subr.mxu0 0.0
    %331 = vmatpush2.xpose.msra.mxu0 0.0
    %332 = vmatprep.subr.mxu0 0.0
    %333 = vmatpush2.xpose.msra.mxu0 0.0
    %334 = vmatprep.subr.mxu0 0.0
    %335 = vmatpush2.xpose.msra.mxu0 0.0
    %336 = vmatprep.mubr.f32.mxu0 0.0
    %v337 = vand.u32 %v38, 4294901760
    %338 = vmatmul.mubr.f32.gmra.mxu0 %v337
    %v339 = vpop.f32.mrf.mxu0
    %v340 = vadd.f32 %v179, %v339
    %v341 = vpop.f32.mrf.mxu0
    %342 = vmatprep.mubr.f32.mxu0 0.0
    %v343 = vand.u32 %v41, 4294901760
    %344 = vmatmul.mubr.f32.gmra.mxu0 %v343
    %v345 = vpop.f32.mrf.mxu0
    %v346 = vadd.f32 %v189, %v345
    %v347 = vpop.f32.mrf.mxu0
    %348 = vdwg.mxu0
    %349 = vmatprep.subr.mxu0 0.0
    %v350 = vand.u32 %v89, 4294901760
    %v351 = vsub.f32 %v89, %v350
    %352 = vmatpush1.xpose.msra.mxu0 %v351
    %353 = vmatprep.subr.mxu0 0.0
    %v354 = vand.u32 %v86, 4294901760
    %v355 = vsub.f32 %v86, %v354
    %356 = vmatpush1.xpose.msra.mxu0 %v355
    %357 = vmatprep.subr.mxu0 0.0
    %v358 = vand.u32 %v83, 4294901760
    %v359 = vsub.f32 %v83, %v358
    %360 = vmatpush1.xpose.msra.mxu0 %v359
    %361 = vmatprep.subr.mxu0 0.0
    %v362 = vand.u32 %v80, 4294901760
    %v363 = vsub.f32 %v80, %v362
    %364 = vmatpush1.xpose.msra.mxu0 %v363
    %365 = vmatprep.subr.mxu0 0.0
    %v366 = vand.u32 %v77, 4294901760
    %v367 = vsub.f32 %v77, %v366
    %368 = vmatpush1.xpose.msra.mxu0 %v367
    %369 = vmatprep.subr.mxu0 0.0
    %v370 = vand.u32 %v74, 4294901760
    %v371 = vsub.f32 %v74, %v370
    %372 = vmatpush1.xpose.msra.mxu0 %v371
    %373 = vmatprep.subr.mxu0 0.0
    %v374 = vand.u32 %v71, 4294901760
    %v375 = vsub.f32 %v71, %v374
    %376 = vmatpush1.xpose.msra.mxu0 %v375
    %377 = vmatprep.subr.mxu0 0.0
    %v378 = vand.u32 %v68, 4294901760
    %v379 = vsub.f32 %v68, %v378
    %380 = vmatpush1.xpose.msra.mxu0 %v379
    %381 = vmatprep.subr.mxu0 0.0
    %v382 = vand.u32 %v65, 4294901760
    %v383 = vsub.f32 %v65, %v382
    %384 = vmatpush1.xpose.msra.mxu0 %v383
    %385 = vmatprep.subr.mxu0 0.0
    %v386 = vand.u32 %v62, 4294901760
    %v387 = vsub.f32 %v62, %v386
    %388 = vmatpush1.xpose.msra.mxu0 %v387
    %389 = vmatprep.subr.mxu0 0.0
    %v390 = vand.u32 %v59, 4294901760
    %v391 = vsub.f32 %v59, %v390
    %392 = vmatpush1.xpose.msra.mxu0 %v391
    %393 = vmatprep.subr.mxu0 0.0
    %v394 = vand.u32 %v56, 4294901760
    %v395 = vsub.f32 %v56, %v394
    %396 = vmatpush1.xpose.msra.mxu0 %v395
    %397 = vmatprep.subr.mxu0 0.0
    %v398 = vand.u32 %v53, 4294901760
    %v399 = vsub.f32 %v53, %v398
    %400 = vmatpush1.xpose.msra.mxu0 %v399
    %401 = vmatprep.subr.mxu0 0.0
    %v402 = vand.u32 %v50, 4294901760
    %v403 = vsub.f32 %v50, %v402
    %404 = vmatpush1.xpose.msra.mxu0 %v403
    %405 = vmatprep.subr.mxu0 0.0
    %v406 = vand.u32 %v47, 4294901760
    %v407 = vsub.f32 %v47, %v406
    %408 = vmatpush1.xpose.msra.mxu0 %v407
    %409 = vmatprep.subr.mxu0 0.0
    %v410 = vand.u32 %v44, 4294901760
    %v411 = vsub.f32 %v44, %v410
    %412 = vmatpush1.xpose.msra.mxu0 %v411
    %413 = vmatprep.subr.mxu0 0.0
    %414 = vmatpush2.xpose.msra.mxu0 0.0
    %415 = vmatprep.subr.mxu0 0.0
    %416 = vmatpush2.xpose.msra.mxu0 0.0
    %417 = vmatprep.subr.mxu0 0.0
    %418 = vmatpush2.xpose.msra.mxu0 0.0
    %419 = vmatprep.subr.mxu0 0.0
    %420 = vmatpush2.xpose.msra.mxu0 0.0
    %421 = vmatprep.subr.mxu0 0.0
    %422 = vmatpush2.xpose.msra.mxu0 0.0
    %423 = vmatprep.subr.mxu0 0.0
    %424 = vmatpush2.xpose.msra.mxu0 0.0
    %425 = vmatprep.subr.mxu0 0.0
    %426 = vmatpush2.xpose.msra.mxu0 0.0
    %427 = vmatprep.subr.mxu0 0.0
    %428 = vmatpush2.xpose.msra.mxu0 0.0
    %429 = vmatprep.subr.mxu0 0.0
    %430 = vmatpush2.xpose.msra.mxu0 0.0
    %431 = vmatprep.subr.mxu0 0.0
    %432 = vmatpush2.xpose.msra.mxu0 0.0
    %433 = vmatprep.subr.mxu0 0.0
    %434 = vmatpush2.xpose.msra.mxu0 0.0
    %435 = vmatprep.subr.mxu0 0.0
    %436 = vmatpush2.xpose.msra.mxu0 0.0
    %437 = vmatprep.subr.mxu0 0.0
    %438 = vmatpush2.xpose.msra.mxu0 0.0
    %439 = vmatprep.subr.mxu0 0.0
    %440 = vmatpush2.xpose.msra.mxu0 0.0
    %441 = vmatprep.subr.mxu0 0.0
    %442 = vmatpush2.xpose.msra.mxu0 0.0
    %443 = vmatprep.subr.mxu0 0.0
    %444 = vmatpush2.xpose.msra.mxu0 0.0
    %445 = vmatprep.mubr.f32.mxu0 0.0
    %v446 = vand.u32 %v38, 4294901760
    %v447 = vsub.f32 %v38, %v446
    %448 = vmatmul.mubr.f32.gmra.mxu0 %v447
    %v449 = vpop.f32.mrf.mxu0
    %v450 = vadd.f32 %v340, %v449
    %v451 = vpop.f32.mrf.mxu0
    %452 = vmatprep.mubr.f32.mxu0 0.0
    %v453 = vand.u32 %v41, 4294901760
    %v454 = vsub.f32 %v41, %v453
    %455 = vmatmul.mubr.f32.gmra.mxu0 %v454
    %v456 = vpop.f32.mrf.mxu0
    %v457 = vadd.f32 %v346, %v456
    %v458 = vpop.f32.mrf.mxu0
    %459 = vdwg.mxu0
    %460 = vmatprep.subr.mxu0 0.0
    %v461 = vand.u32 %v89, 4294901760
    %462 = vmatpush1.xpose.msra.mxu0 %v461
    %463 = vmatprep.subr.mxu0 0.0
    %v464 = vand.u32 %v86, 4294901760
    %465 = vmatpush1.xpose.msra.mxu0 %v464
    %466 = vmatprep.subr.mxu0 0.0
    %v467 = vand.u32 %v83, 4294901760
    %468 = vmatpush1.xpose.msra.mxu0 %v467
    %469 = vmatprep.subr.mxu0 0.0
    %v470 = vand.u32 %v80, 4294901760
    %471 = vmatpush1.xpose.msra.mxu0 %v470
    %472 = vmatprep.subr.mxu0 0.0
    %v473 = vand.u32 %v77, 4294901760
    %474 = vmatpush1.xpose.msra.mxu0 %v473
    %475 = vmatprep.subr.mxu0 0.0
    %v476 = vand.u32 %v74, 4294901760
    %477 = vmatpush1.xpose.msra.mxu0 %v476
    %478 = vmatprep.subr.mxu0 0.0
    %v479 = vand.u32 %v71, 4294901760
    %480 = vmatpush1.xpose.msra.mxu0 %v479
    %481 = vmatprep.subr.mxu0 0.0
    %v482 = vand.u32 %v68, 4294901760
    %483 = vmatpush1.xpose.msra.mxu0 %v482
    %484 = vmatprep.subr.mxu0 0.0
    %v485 = vand.u32 %v65, 4294901760
    %486 = vmatpush1.xpose.msra.mxu0 %v485
    %487 = vmatprep.subr.mxu0 0.0
    %v488 = vand.u32 %v62, 4294901760
    %489 = vmatpush1.xpose.msra.mxu0 %v488
    %490 = vmatprep.subr.mxu0 0.0
    %v491 = vand.u32 %v59, 4294901760
    %492 = vmatpush1.xpose.msra.mxu0 %v491
    %493 = vmatprep.subr.mxu0 0.0
    %v494 = vand.u32 %v56, 4294901760
    %495 = vmatpush1.xpose.msra.mxu0 %v494
    %496 = vmatprep.subr.mxu0 0.0
    %v497 = vand.u32 %v53, 4294901760
    %498 = vmatpush1.xpose.msra.mxu0 %v497
    %499 = vmatprep.subr.mxu0 0.0
    %v500 = vand.u32 %v50, 4294901760
    %501 = vmatpush1.xpose.msra.mxu0 %v500
    %502 = vmatprep.subr.mxu0 0.0
    %v503 = vand.u32 %v47, 4294901760
    %504 = vmatpush1.xpose.msra.mxu0 %v503
    %505 = vmatprep.subr.mxu0 0.0
    %v506 = vand.u32 %v44, 4294901760
    %507 = vmatpush1.xpose.msra.mxu0 %v506
    %508 = vmatprep.subr.mxu0 0.0
    %509 = vmatpush2.xpose.msra.mxu0 0.0
    %510 = vmatprep.subr.mxu0 0.0
    %511 = vmatpush2.xpose.msra.mxu0 0.0
    %512 = vmatprep.subr.mxu0 0.0
    %513 = vmatpush2.xpose.msra.mxu0 0.0
    %514 = vmatprep.subr.mxu0 0.0
    %515 = vmatpush2.xpose.msra.mxu0 0.0
    %516 = vmatprep.subr.mxu0 0.0
    %517 = vmatpush2.xpose.msra.mxu0 0.0
    %518 = vmatprep.subr.mxu0 0.0
    %519 = vmatpush2.xpose.msra.mxu0 0.0
    %520 = vmatprep.subr.mxu0 0.0
    %521 = vmatpush2.xpose.msra.mxu0 0.0
    %522 = vmatprep.subr.mxu0 0.0
    %523 = vmatpush2.xpose.msra.mxu0 0.0
    %524 = vmatprep.subr.mxu0 0.0
    %525 = vmatpush2.xpose.msra.mxu0 0.0
    %526 = vmatprep.subr.mxu0 0.0
    %527 = vmatpush2.xpose.msra.mxu0 0.0
    %528 = vmatprep.subr.mxu0 0.0
    %529 = vmatpush2.xpose.msra.mxu0 0.0
    %530 = vmatprep.subr.mxu0 0.0
    %531 = vmatpush2.xpose.msra.mxu0 0.0
    %532 = vmatprep.subr.mxu0 0.0
    %533 = vmatpush2.xpose.msra.mxu0 0.0
    %534 = vmatprep.subr.mxu0 0.0
    %535 = vmatpush2.xpose.msra.mxu0 0.0
    %536 = vmatprep.subr.mxu0 0.0
    %537 = vmatpush2.xpose.msra.mxu0 0.0
    %538 = vmatprep.subr.mxu0 0.0
    %539 = vmatpush2.xpose.msra.mxu0 0.0
    %540 = vmatprep.mubr.f32.mxu0 0.0
    %v541 = vand.u32 %v38, 4294901760
    %v542 = vsub.f32 %v38, %v541
    %v543 = vand.u32 %v542, 4294901760
    %544 = vmatmul.mubr.f32.gmra.mxu0 %v543
    %v545 = vpop.f32.mrf.mxu0
    %v546 = vadd.f32 %v450, %v545
    %v547 = vpop.f32.mrf.mxu0
    %548 = vmatprep.mubr.f32.mxu0 0.0
    %v549 = vand.u32 %v41, 4294901760
    %v550 = vsub.f32 %v41, %v549
    %v551 = vand.u32 %v550, 4294901760
    %552 = vmatmul.mubr.f32.gmra.mxu0 %v551
    %v553 = vpop.f32.mrf.mxu0
    %v554 = vadd.f32 %v457, %v553
    %v555 = vpop.f32.mrf.mxu0
    %556 = vdwg.mxu0
    %557 = vmatprep.subr.mxu0 0.0
    %v558 = vand.u32 %v89, 4294901760
    %v559 = vsub.f32 %v89, %v558
    %v560 = vand.u32 %v559, 4294901760
    %561 = vmatpush1.xpose.msra.mxu0 %v560
    %562 = vmatprep.subr.mxu0 0.0
    %v563 = vand.u32 %v86, 4294901760
    %v564 = vsub.f32 %v86, %v563
    %v565 = vand.u32 %v564, 4294901760
    %566 = vmatpush1.xpose.msra.mxu0 %v565
    %567 = vmatprep.subr.mxu0 0.0
    %v568 = vand.u32 %v83, 4294901760
    %v569 = vsub.f32 %v83, %v568
    %v570 = vand.u32 %v569, 4294901760
    %571 = vmatpush1.xpose.msra.mxu0 %v570
    %572 = vmatprep.subr.mxu0 0.0
    %v573 = vand.u32 %v80, 4294901760
    %v574 = vsub.f32 %v80, %v573
    %v575 = vand.u32 %v574, 4294901760
    %576 = vmatpush1.xpose.msra.mxu0 %v575
    %577 = vmatprep.subr.mxu0 0.0
    %v578 = vand.u32 %v77, 4294901760
    %v579 = vsub.f32 %v77, %v578
    %v580 = vand.u32 %v579, 4294901760
    %581 = vmatpush1.xpose.msra.mxu0 %v580
    %582 = vmatprep.subr.mxu0 0.0
    %v583 = vand.u32 %v74, 4294901760
    %v584 = vsub.f32 %v74, %v583
    %v585 = vand.u32 %v584, 4294901760
    %586 = vmatpush1.xpose.msra.mxu0 %v585
    %587 = vmatprep.subr.mxu0 0.0
    %v588 = vand.u32 %v71, 4294901760
    %v589 = vsub.f32 %v71, %v588
    %v590 = vand.u32 %v589, 4294901760
    %591 = vmatpush1.xpose.msra.mxu0 %v590
    %592 = vmatprep.subr.mxu0 0.0
    %v593 = vand.u32 %v68, 4294901760
    %v594 = vsub.f32 %v68, %v593
    %v595 = vand.u32 %v594, 4294901760
    %596 = vmatpush1.xpose.msra.mxu0 %v595
    %597 = vmatprep.subr.mxu0 0.0
    %v598 = vand.u32 %v65, 4294901760
    %v599 = vsub.f32 %v65, %v598
    %v600 = vand.u32 %v599, 4294901760
    %601 = vmatpush1.xpose.msra.mxu0 %v600
    %602 = vmatprep.subr.mxu0 0.0
    %v603 = vand.u32 %v62, 4294901760
    %v604 = vsub.f32 %v62, %v603
    %v605 = vand.u32 %v604, 4294901760
    %606 = vmatpush1.xpose.msra.mxu0 %v605
    %607 = vmatprep.subr.mxu0 0.0
    %v608 = vand.u32 %v59, 4294901760
    %v609 = vsub.f32 %v59, %v608
    %v610 = vand.u32 %v609, 4294901760
    %611 = vmatpush1.xpose.msra.mxu0 %v610
    %612 = vmatprep.subr.mxu0 0.0
    %v613 = vand.u32 %v56, 4294901760
    %v614 = vsub.f32 %v56, %v613
    %v615 = vand.u32 %v614, 4294901760
    %616 = vmatpush1.xpose.msra.mxu0 %v615
    %617 = vmatprep.subr.mxu0 0.0
    %v618 = vand.u32 %v53, 4294901760
    %v619 = vsub.f32 %v53, %v618
    %v620 = vand.u32 %v619, 4294901760
    %621 = vmatpush1.xpose.msra.mxu0 %v620
    %622 = vmatprep.subr.mxu0 0.0
    %v623 = vand.u32 %v50, 4294901760
    %v624 = vsub.f32 %v50, %v623
    %v625 = vand.u32 %v624, 4294901760
    %626 = vmatpush1.xpose.msra.mxu0 %v625
    %627 = vmatprep.subr.mxu0 0.0
    %v628 = vand.u32 %v47, 4294901760
    %v629 = vsub.f32 %v47, %v628
    %v630 = vand.u32 %v629, 4294901760
    %631 = vmatpush1.xpose.msra.mxu0 %v630
    %632 = vmatprep.subr.mxu0 0.0
    %v633 = vand.u32 %v44, 4294901760
    %v634 = vsub.f32 %v44, %v633
    %v635 = vand.u32 %v634, 4294901760
    %636 = vmatpush1.xpose.msra.mxu0 %v635
    %637 = vmatprep.subr.mxu0 0.0
    %638 = vmatpush2.xpose.msra.mxu0 0.0
    %639 = vmatprep.subr.mxu0 0.0
    %640 = vmatpush2.xpose.msra.mxu0 0.0
    %641 = vmatprep.subr.mxu0 0.0
    %642 = vmatpush2.xpose.msra.mxu0 0.0
    %643 = vmatprep.subr.mxu0 0.0
    %644 = vmatpush2.xpose.msra.mxu0 0.0
    %645 = vmatprep.subr.mxu0 0.0
    %646 = vmatpush2.xpose.msra.mxu0 0.0
    %647 = vmatprep.subr.mxu0 0.0
    %648 = vmatpush2.xpose.msra.mxu0 0.0
    %649 = vmatprep.subr.mxu0 0.0
    %650 = vmatpush2.xpose.msra.mxu0 0.0
    %651 = vmatprep.subr.mxu0 0.0
    %652 = vmatpush2.xpose.msra.mxu0 0.0
    %653 = vmatprep.subr.mxu0 0.0
    %654 = vmatpush2.xpose.msra.mxu0 0.0
    %655 = vmatprep.subr.mxu0 0.0
    %656 = vmatpush2.xpose.msra.mxu0 0.0
    %657 = vmatprep.subr.mxu0 0.0
    %658 = vmatpush2.xpose.msra.mxu0 0.0
    %659 = vmatprep.subr.mxu0 0.0
    %660 = vmatpush2.xpose.msra.mxu0 0.0
    %661 = vmatprep.subr.mxu0 0.0
    %662 = vmatpush2.xpose.msra.mxu0 0.0
    %663 = vmatprep.subr.mxu0 0.0
    %664 = vmatpush2.xpose.msra.mxu0 0.0
    %665 = vmatprep.subr.mxu0 0.0
    %666 = vmatpush2.xpose.msra.mxu0 0.0
    %667 = vmatprep.subr.mxu0 0.0
    %668 = vmatpush2.xpose.msra.mxu0 0.0
    %669 = vmatprep.mubr.f32.mxu0 0.0
    %v670 = vand.u32 %v38, 4294901760
    %671 = vmatmul.mubr.f32.gmra.mxu0 %v670
    %v672 = vpop.f32.mrf.mxu0
    %v673 = vadd.f32 %v546, %v672
    %v674 = vpop.f32.mrf.mxu0
    %675 = vmatprep.mubr.f32.mxu0 0.0
    %v676 = vand.u32 %v41, 4294901760
    %677 = vmatmul.mubr.f32.gmra.mxu0 %v676
    %v678 = vpop.f32.mrf.mxu0
    %v679 = vadd.f32 %v554, %v678
    %v680 = vpop.f32.mrf.mxu0
    %681 = vdwg.mxu0
    %682 = vmatprep.subr.mxu0 0.0
    %v683 = vand.u32 %v89, 4294901760
    %684 = vmatpush1.xpose.msra.mxu0 %v683
    %685 = vmatprep.subr.mxu0 0.0
    %v686 = vand.u32 %v86, 4294901760
    %687 = vmatpush1.xpose.msra.mxu0 %v686
    %688 = vmatprep.subr.mxu0 0.0
    %v689 = vand.u32 %v83, 4294901760
    %690 = vmatpush1.xpose.msra.mxu0 %v689
    %691 = vmatprep.subr.mxu0 0.0
    %v692 = vand.u32 %v80, 4294901760
    %693 = vmatpush1.xpose.msra.mxu0 %v692
    %694 = vmatprep.subr.mxu0 0.0
    %v695 = vand.u32 %v77, 4294901760
    %696 = vmatpush1.xpose.msra.mxu0 %v695
    %697 = vmatprep.subr.mxu0 0.0
    %v698 = vand.u32 %v74, 4294901760
    %699 = vmatpush1.xpose.msra.mxu0 %v698
    %700 = vmatprep.subr.mxu0 0.0
    %v701 = vand.u32 %v71, 4294901760
    %702 = vmatpush1.xpose.msra.mxu0 %v701
    %703 = vmatprep.subr.mxu0 0.0
    %v704 = vand.u32 %v68, 4294901760
    %705 = vmatpush1.xpose.msra.mxu0 %v704
    %706 = vmatprep.subr.mxu0 0.0
    %v707 = vand.u32 %v65, 4294901760
    %708 = vmatpush1.xpose.msra.mxu0 %v707
    %709 = vmatprep.subr.mxu0 0.0
    %v710 = vand.u32 %v62, 4294901760
    %711 = vmatpush1.xpose.msra.mxu0 %v710
    %712 = vmatprep.subr.mxu0 0.0
    %v713 = vand.u32 %v59, 4294901760
    %714 = vmatpush1.xpose.msra.mxu0 %v713
    %715 = vmatprep.subr.mxu0 0.0
    %v716 = vand.u32 %v56, 4294901760
    %717 = vmatpush1.xpose.msra.mxu0 %v716
    %718 = vmatprep.subr.mxu0 0.0
    %v719 = vand.u32 %v53, 4294901760
    %720 = vmatpush1.xpose.msra.mxu0 %v719
    %721 = vmatprep.subr.mxu0 0.0
    %v722 = vand.u32 %v50, 4294901760
    %723 = vmatpush1.xpose.msra.mxu0 %v722
    %724 = vmatprep.subr.mxu0 0.0
    %v725 = vand.u32 %v47, 4294901760
    %726 = vmatpush1.xpose.msra.mxu0 %v725
    %727 = vmatprep.subr.mxu0 0.0
    %v728 = vand.u32 %v44, 4294901760
    %729 = vmatpush1.xpose.msra.mxu0 %v728
    %730 = vmatprep.subr.mxu0 0.0
    %731 = vmatpush2.xpose.msra.mxu0 0.0
    %732 = vmatprep.subr.mxu0 0.0
    %733 = vmatpush2.xpose.msra.mxu0 0.0
    %734 = vmatprep.subr.mxu0 0.0
    %735 = vmatpush2.xpose.msra.mxu0 0.0
    %736 = vmatprep.subr.mxu0 0.0
    %737 = vmatpush2.xpose.msra.mxu0 0.0
    %738 = vmatprep.subr.mxu0 0.0
    %739 = vmatpush2.xpose.msra.mxu0 0.0
    %740 = vmatprep.subr.mxu0 0.0
    %741 = vmatpush2.xpose.msra.mxu0 0.0
    %742 = vmatprep.subr.mxu0 0.0
    %743 = vmatpush2.xpose.msra.mxu0 0.0
    %744 = vmatprep.subr.mxu0 0.0
    %745 = vmatpush2.xpose.msra.mxu0 0.0
    %746 = vmatprep.subr.mxu0 0.0
    %747 = vmatpush2.xpose.msra.mxu0 0.0
    %748 = vmatprep.subr.mxu0 0.0
    %749 = vmatpush2.xpose.msra.mxu0 0.0
    %750 = vmatprep.subr.mxu0 0.0
    %751 = vmatpush2.xpose.msra.mxu0 0.0
    %752 = vmatprep.subr.mxu0 0.0
    %753 = vmatpush2.xpose.msra.mxu0 0.0
    %754 = vmatprep.subr.mxu0 0.0
    %755 = vmatpush2.xpose.msra.mxu0 0.0
    %756 = vmatprep.subr.mxu0 0.0
    %757 = vmatpush2.xpose.msra.mxu0 0.0
    %758 = vmatprep.subr.mxu0 0.0
    %759 = vmatpush2.xpose.msra.mxu0 0.0
    %760 = vmatprep.subr.mxu0 0.0
    %761 = vmatpush2.xpose.msra.mxu0 0.0
    %762 = vmatprep.mubr.f32.mxu0 0.0
    %v763 = vand.u32 %v38, 4294901760
    %764 = vmatmul.mubr.f32.gmra.mxu0 %v763
    %v765 = vpop.f32.mrf.mxu0
    %v766 = vadd.f32 %v673, %v765
    %v767 = vpop.f32.mrf.mxu0
    %768 = vmatprep.mubr.f32.mxu0 0.0
    %v769 = vand.u32 %v41, 4294901760
    %770 = vmatmul.mubr.f32.gmra.mxu0 %v769
    %v771 = vpop.f32.mrf.mxu0
    %v772 = vadd.f32 %v679, %v771
    %v773 = vpop.f32.mrf.mxu0
    %774 = vdwg.mxu0
    %v775 = vld [vmem:[%s1] sm:$0xff]
    %v776 = vld [vmem:[%s1 + $0x8] sm:$0xff]
    %v777 = vld [vmem:[%s3] sm:$0x1]
    %779 = vset.pattern.permute.xlu0 0
    %780 = vperm.xlu0 %779, %v775
    %v781 = vpop.permute.xlu0 %780
    %784 = vset.pattern.permute.xlu0 0
    %785 = vperm.xlu0 %784, %v776
    %v786 = vpop.permute.xlu0 %785
    %v789 = vlaneseq
    %v790 = vshrl.u32 %v789, 7
    %v791 = vsub.s32 0, %v790
    %v792 = vrot.slane %v777, %v791
    %v794 = vadd.f32 %v781, %v792
    %v795 = vadd.f32 %v786, %v792
    %v796 = vmul.f32 %v766, 2.0
    %v797 = vmul.f32 %v772, 2.0
    %v798 = vsub.f32 %v794, %v796
    %v799 = vsub.f32 %v795, %v797
    %v800 = vmax.f32 %v798, 0.0
    %v801 = vmax.f32 %v799, 0.0
    %v802 = vmul.f32 %v800, -0.5
    %v803 = vmul.f32 %v801, -0.5
    %v804 = vmul.f32 %v802, 1.442695
    %v805 = vpow.pop %v804
    %v806 = vmul.f32 %v803, 1.442695
    %v807 = vpow.pop %v806
    %808 = vst [vmem:[#allocation2] sm:$0xff] %v805
    %809 = vst [vmem:[#allocation2 + $0x8] sm:$0xff] %v807
    // Predicated region
    $region18: #{tpu_custom_call.1} parent=1 // pred_check
      _
    $region19: #{tpu_custom_call.1} parent=1 // pred_check_branch
      %811 = sbr.rel (0) target = $region21
    $region20: #{tpu_custom_call.1} parent=1 // pred_region
      %s813 = ssub.s32 256, 256
      %814 = vsyncadd [#allocation3], %s813
      %s815 = sshll.u32 [#allocation2], 4
      %s816 = int_to_ptr.vmem [resolvable:$true] %s815
      %821 = dma.vmem_to_hbm [thread:$0]  %s816, 256, %s4, [#allocation3], 128, 128, 8
    $region21: #{tpu_custom_call.1} parent=1 // pred_fallthru
      _
    // Predicated region
    $region22: #{tpu_custom_call.1} parent=1 // pred_check
      _
    $region23: #{tpu_custom_call.1} parent=1 // pred_check_branch
      %823 = sbr.rel (0) target = $region25
    $region24: #{tpu_custom_call.1} parent=1 // pred_region
      %824 = dma.done [#allocation3], 256
    $region25: #{tpu_custom_call.1} parent=1 // pred_fallthru
      _
    %825 = vsyncpa [#allocation3], 1

</llo_original>
